<compile_context>
chip_gen: v6e
topology: v6e:2x2x1
jax: 0.10.0
libtpu: 0.0.40
codegen_flags: <defaults>
</compile_context>

<pallas_src>
import functools

import jax
import jax.numpy as jnp
from jax.experimental import pallas as pl
from jax.experimental.pallas import tpu as pltpu


# im2col (one matmul over K*C_in) only pays while the contraction is below one
# MXU pass (128 on v5e, 256 on v6e/v7x); above that use K accumulated matmuls
# so the activation is never duplicated K-fold in VMEM.
_MXU_CONTRACTION = 256


# ---------------------------------------------------------------------------
# In-kernel dilated causal conv (+ bias) on a VMEM-resident activation
# ---------------------------------------------------------------------------
def _causal_conv(h, w_ref, b_ref, K, dil, C_in, L):
    """h: (C_in, L) compute dtype (bf16). w_ref: (C_out, K*C_in) flat im2col
    layout (W_flat[:, k*C_in + c] == W_pt[:, c, k]). b_ref: (C_out, 1) f32.
    Returns f32 (C_out, L) = causal dilated conv + bias."""
    pad = (K - 1) * dil
    if pad == 0:
        return jnp.dot(w_ref[...], h, preferred_element_type=jnp.float32) + b_ref[...]

    # Causal left pad built ONCE (VMEM/registers only; no K*C x L stacked copy).
    hp = jnp.concatenate([jnp.zeros((h.shape[0], pad), h.dtype), h], axis=1)

    if K * C_in <= _MXU_CONTRACTION:
        # Under-filled contraction: lengthen it via im2col -> one MXU matmul.
        stacked = jnp.concatenate(
            [hp[:, k * dil: k * dil + L] for k in range(K)], axis=0)
        acc = jnp.dot(w_ref[...], stacked, preferred_element_type=jnp.float32)
    else:
        # Contraction already fills the MXU: K accumulated matmuls, no stack.
        acc = jnp.dot(w_ref[:, :C_in], hp[:, :L],
                      preferred_element_type=jnp.float32)
        for k in range(1, K):
            acc = acc + jnp.dot(
                w_ref[:, k * C_in:(k + 1) * C_in],
                hp[:, k * dil: k * dil + L],
                preferred_element_type=jnp.float32)
    return acc + b_ref[...]


# ---------------------------------------------------------------------------
# Fully-fused TemporalConvNet kernel (all residual blocks in one pallas_call)
# ---------------------------------------------------------------------------
def _make_tcn_kernel(cfgs, L):
    """cfgs: static tuple of (K, dil, C_in, C_out, has_down) per block."""

    def kernel(*refs):
        refs = list(refs)
        x_ref = refs[0]
        out_ref = refs[-1]
        w_refs = refs[1:-1]

        h_c = x_ref[0]                        # (C0, L) bf16, VMEM-resident
        cdt = h_c.dtype
        h_f = h_c.astype(jnp.float32)
        wi = 0
        for (K, dil, C_in, C_out, has_down) in cfgs:
            w1, b1, w2, b2 = w_refs[wi:wi + 4]
            wi += 4
            if has_down:
                wd, bd = w_refs[wi:wi + 2]
                wi += 2
            # conv1 + bias + ReLU    (dropout == identity at inference)
            h1 = jnp.maximum(_causal_conv(h_c, w1, b1, K, dil, C_in, L), 0.0)
            # conv2 + bias + ReLU
            h2 = jnp.maximum(
                _causal_conv(h1.astype(cdt), w2, b2, K, dil, C_out, L), 0.0)
            # residual path: 1x1 downsample conv or identity, then final ReLU
            if has_down:
                res = jnp.dot(wd[...], h_c,
                              preferred_element_type=jnp.float32) + bd[...]
            else:
                res = h_c.astype(jnp.float32)
            h_f = jnp.maximum(h2 + res, 0.0)          # (C_out, L) f32
            h_c = h_f.astype(cdt)                     # next block's MXU input

        # Only the last-timestep features leave the kernel; the Linear +
        # log_softmax head runs as one batched GEMM outside.
        out_ref[0] = h_f[:, L - 1:L]                  # (C_last, 1) f32

    return kernel


def tcn_features(params, x, *, interpret=False):
    """x: (N, C0, L) -> (N, C_last, 1) f32 last-timestep features.
    ONE fused pallas_call over all residual blocks (activations never hit HBM)."""
    blocks = params["blocks"]
    N, C0, L = x.shape
    cdt = blocks[0]["w1"].dtype
    xc = x.astype(cdt)

    cfgs = []
    in_specs = [pl.BlockSpec((1, C0, L), lambda n: (n, 0, 0))]
    args = [xc]
    weight_bytes = 0
    act_elems = 0
    c_in = C0
    for blk in blocks:
        K = int(blk["k"])
        dil = int(blk["dil"])
        c_out = int(blk["b1"].shape[0])
        has_down = blk["wd"] is not None
        if not has_down:
            assert c_in == c_out, "identity residual path requires C_in == C_out"
        cfgs.append((K, dil, c_in, c_out, has_down))
        wlist = [
            (blk["w1"], (c_out, K * c_in)),
            (blk["b1"], (c_out, 1)),
            (blk["w2"], (c_out, K * c_out)),
            (blk["b2"], (c_out, 1)),
        ]
        if has_down:
            wlist += [(blk["wd"], (c_out, c_in)), (blk["bd"], (c_out, 1))]
        for arr, shp in wlist:
            assert tuple(arr.shape) == shp
            # Constant index_map: same weight tile for every grid step.
            in_specs.append(pl.BlockSpec(shp, lambda n: (0, 0)))
            args.append(arr)
            weight_bytes += arr.size * arr.dtype.itemsize
        pad = (K - 1) * dil
        act_elems += (c_in + 3 * c_out) * (L + pad)   # rough per-block f32 live set
        c_in = c_out
    c_last = c_in

    # Explicit scoped-VMEM budget: double-buffered weights + activation working
    # set with headroom, clamped to v7x's 64 MiB physical VMEM.
    vmem_limit = int(min(64 * 2**20,
                         max(16 * 2**20, 2 * weight_bytes + 8 * act_elems * 4)))

    kernel = _make_tcn_kernel(tuple(cfgs), L)
    return pl.pallas_call(
        kernel,
        out_shape=jax.ShapeDtypeStruct((N, c_last, 1), jnp.float32),
        grid=(N,),
        in_specs=in_specs,
        out_specs=pl.BlockSpec((1, c_last, 1), lambda n: (n, 0, 0)),
        compiler_params=pltpu.CompilerParams(
            dimension_semantics=("parallel",),        # batch over v7x's 2 TCs
            vmem_limit_bytes=vmem_limit),
        interpret=interpret,
    )(*args)


# ---------------------------------------------------------------------------
# Model: parameter construction + forward
# ---------------------------------------------------------------------------
def init_tcn_params(key, input_size, output_size, num_channels, kernel_size,
                    dtype=jnp.bfloat16):
    """Conv weights stored pre-flattened in im2col layout (C_out, K*C_in):
    W_flat[:, k*C_in + c] == W_pytorch[:, c, k]  (w_pt.transpose(0,2,1).reshape);
    weight_norm g/v must be folded before conversion."""
    params = {"blocks": []}
    in_ch = input_size
    for i, out_ch in enumerate(num_channels):
        dil = 2 ** i
        key, k1, k2, k3, k4, k5, k6 = jax.random.split(key, 7)
        blk = {
            "dil": dil,
            "k": kernel_size,
            "w1": (0.01 * jax.random.normal(
                k1, (out_ch, kernel_size * in_ch), jnp.float32)).astype(dtype),
            "b1": 0.01 * jax.random.normal(k2, (out_ch, 1), jnp.float32),
            "w2": (0.01 * jax.random.normal(
                k3, (out_ch, kernel_size * out_ch), jnp.float32)).astype(dtype),
            "b2": 0.01 * jax.random.normal(k4, (out_ch, 1), jnp.float32),
        }
        if in_ch != out_ch:  # 1x1 downsample conv on the residual path
            blk["wd"] = (0.01 * jax.random.normal(
                k5, (out_ch, in_ch), jnp.float32)).astype(dtype)
            blk["bd"] = 0.01 * jax.random.normal(k6, (out_ch, 1), jnp.float32)
        else:
            blk["wd"] = None
            blk["bd"] = None
        params["blocks"].append(blk)
        in_ch = out_ch

    key, k1, k2 = jax.random.split(key, 3)
    params["lw"] = 0.01 * jax.random.normal(k1, (output_size, in_ch), jnp.float32)
    params["lb"] = 0.01 * jax.random.normal(k2, (output_size, 1), jnp.float32)
    return params


def tcn_forward(params, x):
    """x: (N, C_in, L) -> (N, output_size) log-probabilities."""
    feats = tcn_features(params, x)[:, :, 0]                 # (N, C_last) f32
    # Batched classification head: one (N,C)@(C,O) GEMM + lane-reduce softmax.
    logits = feats @ params["lw"].T + params["lb"][:, 0]      # (N, O) f32
    return jax.nn.log_softmax(logits, axis=-1)


# ---------------------------------------------------------------------------
if __name__ == "__main__":
    # Small config consistent with TCN(input_size, output_size, num_channels,
    # kernel_size, dropout) on (N, C_in, L) inputs.
    N, input_size, L = 2, 4, 16
    output_size = 5
    num_channels = [8, 8]
    kernel_size = 3
    # dropout = 0.1 -> identity in inference mode (not applied)

    key = jax.random.PRNGKey(0)
    pkey, xkey = jax.random.split(key)
    params = init_tcn_params(pkey, input_size, output_size, num_channels,
                             kernel_size)
    x = jax.random.normal(xkey, (N, input_size, L), jnp.float32)

    fwd = jax.jit(functools.partial(tcn_forward, params))
    out = fwd(x)
    jax.block_until_ready(out)

    assert out.shape == (N, output_size)
    # rows of log_softmax must exponentiate to 1
    assert jnp.allclose(jnp.exp(out).sum(axis=1), 1.0, atol=1e-5)
    print("KERNEL_OK")
</pallas_src>

<mosaic_0001>
module attributes {stable_mosaic.version = 11 : i64} {
  func.func @kernel(%arg0: i32, %arg1: memref<1x4x16xbf16, #tpu.memory_space<vmem>>, %arg2: memref<8x12xbf16, #tpu.memory_space<vmem>>, %arg3: memref<8x1xf32, #tpu.memory_space<vmem>>, %arg4: memref<8x24xbf16, #tpu.memory_space<vmem>>, %arg5: memref<8x1xf32, #tpu.memory_space<vmem>>, %arg6: memref<8x4xbf16, #tpu.memory_space<vmem>>, %arg7: memref<8x1xf32, #tpu.memory_space<vmem>>, %arg8: memref<8x24xbf16, #tpu.memory_space<vmem>>, %arg9: memref<8x1xf32, #tpu.memory_space<vmem>>, %arg10: memref<8x24xbf16, #tpu.memory_space<vmem>>, %arg11: memref<8x1xf32, #tpu.memory_space<vmem>>, %arg12: memref<1x8x1xf32, #tpu.memory_space<vmem>>) attributes {dimension_semantics = [#tpu.dimension_semantics<parallel>], iteration_bounds = array<i64: 2>, scalar_prefetch = 0 : i64, scratch_operands = 0 : i64, tpu.core_type = #tpu.core_type<tc>, window_params = [{transform_indices = @transform_0, window_bounds = array<i64: 1, 4, 16>}, {pipeline_mode = #tpu.pipeline_mode<synchronous>, transform_indices = @transform_1, window_bounds = array<i64: 8, 12>}, {pipeline_mode = #tpu.pipeline_mode<synchronous>, transform_indices = @transform_2, window_bounds = array<i64: 8, 1>}, {pipeline_mode = #tpu.pipeline_mode<synchronous>, transform_indices = @transform_3, window_bounds = array<i64: 8, 24>}, {pipeline_mode = #tpu.pipeline_mode<synchronous>, transform_indices = @transform_4, window_bounds = array<i64: 8, 1>}, {pipeline_mode = #tpu.pipeline_mode<synchronous>, transform_indices = @transform_5, window_bounds = array<i64: 8, 4>}, {pipeline_mode = #tpu.pipeline_mode<synchronous>, transform_indices = @transform_6, window_bounds = array<i64: 8, 1>}, {pipeline_mode = #tpu.pipeline_mode<synchronous>, transform_indices = @transform_7, window_bounds = array<i64: 8, 24>}, {pipeline_mode = #tpu.pipeline_mode<synchronous>, transform_indices = @transform_8, window_bounds = array<i64: 8, 1>}, {pipeline_mode = #tpu.pipeline_mode<synchronous>, transform_indices = @transform_9, window_bounds = array<i64: 8, 24>}, {pipeline_mode = #tpu.pipeline_mode<synchronous>, transform_indices = @transform_10, window_bounds = array<i64: 8, 1>}, {transform_indices = @transform_11, window_bounds = array<i64: 1, 8, 1>}]} {
    %c0 = arith.constant 0 : index
    %c0_0 = arith.constant 0 : index
    %c0_1 = arith.constant 0 : index
    %0 = vector.load %arg1[%c0, %c0_0, %c0_1] : memref<1x4x16xbf16, #tpu.memory_space<vmem>>, vector<1x4x16xbf16>
    %1 = vector.shape_cast %0 : vector<1x4x16xbf16> to vector<4x16xbf16>
    %cst = arith.constant 0.000000e+00 : bf16
    %2 = vector.broadcast %cst : bf16 to vector<4x2xbf16>
    %3 = tpu.concatenate %2, %1 in 1 : vector<4x2xbf16>, vector<4x16xbf16> -> vector<4x18xbf16>
    %4 = vector.extract_strided_slice %3 {offsets = [0, 0], sizes = [4, 16], strides = [1, 1]} : vector<4x18xbf16> to vector<4x16xbf16>
    %5 = vector.extract_strided_slice %3 {offsets = [0, 1], sizes = [4, 16], strides = [1, 1]} : vector<4x18xbf16> to vector<4x16xbf16>
    %6 = vector.extract_strided_slice %3 {offsets = [0, 2], sizes = [4, 16], strides = [1, 1]} : vector<4x18xbf16> to vector<4x16xbf16>
    %7 = tpu.concatenate %4, %5, %6 in 0 : vector<4x16xbf16>, vector<4x16xbf16>, vector<4x16xbf16> -> vector<12x16xbf16>
    %c0_2 = arith.constant 0 : index
    %c0_3 = arith.constant 0 : index
    %8 = vector.load %arg2[%c0_2, %c0_3] : memref<8x12xbf16, #tpu.memory_space<vmem>>, vector<8x12xbf16>
    %cst_4 = arith.constant dense<0.000000e+00> : vector<8x16xf32>
    %9 = tpu.matmul %8, %7, %cst_4 {dimension_numbers = #tpu.dot_dimension_numbers<[1], [0], [0], [1], [0, 0, 1, 1], [], []>} : vector<8x12xbf16>, vector<12x16xbf16>, vector<8x16xf32> -> vector<8x16xf32>
    %c0_5 = arith.constant 0 : index
    %c0_6 = arith.constant 0 : index
    %10 = vector.load %arg3[%c0_5, %c0_6] : memref<8x1xf32, #tpu.memory_space<vmem>>, vector<8x1xf32>
    %11 = vector.broadcast %10 : vector<8x1xf32> to vector<8x16xf32>
    %12 = arith.addf %9, %11 : vector<8x16xf32>
    %cst_7 = arith.constant 0.000000e+00 : f32
    %13 = vector.broadcast %cst_7 : f32 to vector<8x16xf32>
    %14 = arith.maximumf %12, %13 : vector<8x16xf32>
    %15 = arith.truncf %14 : vector<8x16xf32> to vector<8x16xbf16>
    %cst_8 = arith.constant 0.000000e+00 : bf16
    %16 = vector.broadcast %cst_8 : bf16 to vector<8x2xbf16>
    %17 = tpu.concatenate %16, %15 in 1 : vector<8x2xbf16>, vector<8x16xbf16> -> vector<8x18xbf16>
    %18 = vector.extract_strided_slice %17 {offsets = [0, 0], sizes = [8, 16], strides = [1, 1]} : vector<8x18xbf16> to vector<8x16xbf16>
    %19 = vector.extract_strided_slice %17 {offsets = [0, 1], sizes = [8, 16], strides = [1, 1]} : vector<8x18xbf16> to vector<8x16xbf16>
    %20 = vector.extract_strided_slice %17 {offsets = [0, 2], sizes = [8, 16], strides = [1, 1]} : vector<8x18xbf16> to vector<8x16xbf16>
    %21 = tpu.concatenate %18, %19, %20 in 0 : vector<8x16xbf16>, vector<8x16xbf16>, vector<8x16xbf16> -> vector<24x16xbf16>
    %c0_9 = arith.constant 0 : index
    %c0_10 = arith.constant 0 : index
    %22 = vector.load %arg4[%c0_9, %c0_10] : memref<8x24xbf16, #tpu.memory_space<vmem>>, vector<8x24xbf16>
    %cst_11 = arith.constant dense<0.000000e+00> : vector<8x16xf32>
    %23 = tpu.matmul %22, %21, %cst_11 {dimension_numbers = #tpu.dot_dimension_numbers<[1], [0], [0], [1], [0, 0, 1, 1], [], []>} : vector<8x24xbf16>, vector<24x16xbf16>, vector<8x16xf32> -> vector<8x16xf32>
    %c0_12 = arith.constant 0 : index
    %c0_13 = arith.constant 0 : index
    %24 = vector.load %arg5[%c0_12, %c0_13] : memref<8x1xf32, #tpu.memory_space<vmem>>, vector<8x1xf32>
    %25 = vector.broadcast %24 : vector<8x1xf32> to vector<8x16xf32>
    %26 = arith.addf %23, %25 : vector<8x16xf32>
    %cst_14 = arith.constant 0.000000e+00 : f32
    %27 = vector.broadcast %cst_14 : f32 to vector<8x16xf32>
    %28 = arith.maximumf %26, %27 : vector<8x16xf32>
    %c0_15 = arith.constant 0 : index
    %c0_16 = arith.constant 0 : index
    %29 = vector.load %arg6[%c0_15, %c0_16] : memref<8x4xbf16, #tpu.memory_space<vmem>>, vector<8x4xbf16>
    %cst_17 = arith.constant dense<0.000000e+00> : vector<8x16xf32>
    %30 = tpu.matmul %29, %1, %cst_17 {dimension_numbers = #tpu.dot_dimension_numbers<[1], [0], [0], [1], [0, 0, 1, 1], [], []>} : vector<8x4xbf16>, vector<4x16xbf16>, vector<8x16xf32> -> vector<8x16xf32>
    %c0_18 = arith.constant 0 : index
    %c0_19 = arith.constant 0 : index
    %31 = vector.load %arg7[%c0_18, %c0_19] : memref<8x1xf32, #tpu.memory_space<vmem>>, vector<8x1xf32>
    %32 = vector.broadcast %31 : vector<8x1xf32> to vector<8x16xf32>
    %33 = arith.addf %30, %32 : vector<8x16xf32>
    %34 = arith.addf %28, %33 : vector<8x16xf32>
    %cst_20 = arith.constant 0.000000e+00 : f32
    %35 = vector.broadcast %cst_20 : f32 to vector<8x16xf32>
    %36 = arith.maximumf %34, %35 : vector<8x16xf32>
    %37 = arith.truncf %36 : vector<8x16xf32> to vector<8x16xbf16>
    %cst_21 = arith.constant 0.000000e+00 : bf16
    %38 = vector.broadcast %cst_21 : bf16 to vector<8x4xbf16>
    %39 = tpu.concatenate %38, %37 in 1 : vector<8x4xbf16>, vector<8x16xbf16> -> vector<8x20xbf16>
    %40 = vector.extract_strided_slice %39 {offsets = [0, 0], sizes = [8, 16], strides = [1, 1]} : vector<8x20xbf16> to vector<8x16xbf16>
    %41 = vector.extract_strided_slice %39 {offsets = [0, 2], sizes = [8, 16], strides = [1, 1]} : vector<8x20xbf16> to vector<8x16xbf16>
    %42 = vector.extract_strided_slice %39 {offsets = [0, 4], sizes = [8, 16], strides = [1, 1]} : vector<8x20xbf16> to vector<8x16xbf16>
    %43 = tpu.concatenate %40, %41, %42 in 0 : vector<8x16xbf16>, vector<8x16xbf16>, vector<8x16xbf16> -> vector<24x16xbf16>
    %c0_22 = arith.constant 0 : index
    %c0_23 = arith.constant 0 : index
    %44 = vector.load %arg8[%c0_22, %c0_23] : memref<8x24xbf16, #tpu.memory_space<vmem>>, vector<8x24xbf16>
    %cst_24 = arith.constant dense<0.000000e+00> : vector<8x16xf32>
    %45 = tpu.matmul %44, %43, %cst_24 {dimension_numbers = #tpu.dot_dimension_numbers<[1], [0], [0], [1], [0, 0, 1, 1], [], []>} : vector<8x24xbf16>, vector<24x16xbf16>, vector<8x16xf32> -> vector<8x16xf32>
    %c0_25 = arith.constant 0 : index
    %c0_26 = arith.constant 0 : index
    %46 = vector.load %arg9[%c0_25, %c0_26] : memref<8x1xf32, #tpu.memory_space<vmem>>, vector<8x1xf32>
    %47 = vector.broadcast %46 : vector<8x1xf32> to vector<8x16xf32>
    %48 = arith.addf %45, %47 : vector<8x16xf32>
    %cst_27 = arith.constant 0.000000e+00 : f32
    %49 = vector.broadcast %cst_27 : f32 to vector<8x16xf32>
    %50 = arith.maximumf %48, %49 : vector<8x16xf32>
    %51 = arith.truncf %50 : vector<8x16xf32> to vector<8x16xbf16>
    %cst_28 = arith.constant 0.000000e+00 : bf16
    %52 = vector.broadcast %cst_28 : bf16 to vector<8x4xbf16>
    %53 = tpu.concatenate %52, %51 in 1 : vector<8x4xbf16>, vector<8x16xbf16> -> vector<8x20xbf16>
    %54 = vector.extract_strided_slice %53 {offsets = [0, 0], sizes = [8, 16], strides = [1, 1]} : vector<8x20xbf16> to vector<8x16xbf16>
    %55 = vector.extract_strided_slice %53 {offsets = [0, 2], sizes = [8, 16], strides = [1, 1]} : vector<8x20xbf16> to vector<8x16xbf16>
    %56 = vector.extract_strided_slice %53 {offsets = [0, 4], sizes = [8, 16], strides = [1, 1]} : vector<8x20xbf16> to vector<8x16xbf16>
    %57 = tpu.concatenate %54, %55, %56 in 0 : vector<8x16xbf16>, vector<8x16xbf16>, vector<8x16xbf16> -> vector<24x16xbf16>
    %c0_29 = arith.constant 0 : index
    %c0_30 = arith.constant 0 : index
    %58 = vector.load %arg10[%c0_29, %c0_30] : memref<8x24xbf16, #tpu.memory_space<vmem>>, vector<8x24xbf16>
    %cst_31 = arith.constant dense<0.000000e+00> : vector<8x16xf32>
    %59 = tpu.matmul %58, %57, %cst_31 {dimension_numbers = #tpu.dot_dimension_numbers<[1], [0], [0], [1], [0, 0, 1, 1], [], []>} : vector<8x24xbf16>, vector<24x16xbf16>, vector<8x16xf32> -> vector<8x16xf32>
    %c0_32 = arith.constant 0 : index
    %c0_33 = arith.constant 0 : index
    %60 = vector.load %arg11[%c0_32, %c0_33] : memref<8x1xf32, #tpu.memory_space<vmem>>, vector<8x1xf32>
    %61 = vector.broadcast %60 : vector<8x1xf32> to vector<8x16xf32>
    %62 = arith.addf %59, %61 : vector<8x16xf32>
    %cst_34 = arith.constant 0.000000e+00 : f32
    %63 = vector.broadcast %cst_34 : f32 to vector<8x16xf32>
    %64 = arith.maximumf %62, %63 : vector<8x16xf32>
    %65 = arith.extf %37 : vector<8x16xbf16> to vector<8x16xf32>
    %66 = arith.addf %64, %65 : vector<8x16xf32>
    %cst_35 = arith.constant 0.000000e+00 : f32
    %67 = vector.broadcast %cst_35 : f32 to vector<8x16xf32>
    %68 = arith.maximumf %66, %67 : vector<8x16xf32>
    %69 = vector.extract_strided_slice %68 {offsets = [0, 15], sizes = [8, 1], strides = [1, 1]} : vector<8x16xf32> to vector<8x1xf32>
    %c0_36 = arith.constant 0 : index
    %c0_37 = arith.constant 0 : index
    %c0_38 = arith.constant 0 : index
    %70 = vector.load %arg12[%c0_36, %c0_37, %c0_38] : memref<1x8x1xf32, #tpu.memory_space<vmem>>, vector<1x8x1xf32>
    %71 = vector.shape_cast %70 : vector<1x8x1xf32> to vector<8x1xf32>
    %72 = vector.shape_cast %69 : vector<8x1xf32> to vector<1x8x1xf32>
    tpu.vector_store %arg12[%c0_36, %c0_37, %c0_38], %72 {strides = array<i32>} : memref<1x8x1xf32, #tpu.memory_space<vmem>>, vector<1x8x1xf32>,
    return
  }
  func.func @transform_0(%arg0: i32) -> (i32, i32, i32) {
    %c0_i32 = arith.constant 0 : i32
    %c0_i32_0 = arith.constant 0 : i32
    %c0_i32_1 = arith.constant 0 : i32
    return %arg0, %c0_i32, %c0_i32_0 : i32, i32, i32
  }
  func.func @transform_1(%arg0: i32) -> (i32, i32) {
    %c0_i32 = arith.constant 0 : i32
    %c0_i32_0 = arith.constant 0 : i32
    %c0_i32_1 = arith.constant 0 : i32
    return %c0_i32, %c0_i32_0 : i32, i32
  }
  func.func @transform_2(%arg0: i32) -> (i32, i32) {
    %c0_i32 = arith.constant 0 : i32
    %c0_i32_0 = arith.constant 0 : i32
    %c0_i32_1 = arith.constant 0 : i32
    return %c0_i32, %c0_i32_0 : i32, i32
  }
  func.func @transform_3(%arg0: i32) -> (i32, i32) {
    %c0_i32 = arith.constant 0 : i32
    %c0_i32_0 = arith.constant 0 : i32
    %c0_i32_1 = arith.constant 0 : i32
    return %c0_i32, %c0_i32_0 : i32, i32
  }
  func.func @transform_4(%arg0: i32) -> (i32, i32) {
    %c0_i32 = arith.constant 0 : i32
    %c0_i32_0 = arith.constant 0 : i32
    %c0_i32_1 = arith.constant 0 : i32
    return %c0_i32, %c0_i32_0 : i32, i32
  }
  func.func @transform_5(%arg0: i32) -> (i32, i32) {
    %c0_i32 = arith.constant 0 : i32
    %c0_i32_0 = arith.constant 0 : i32
    %c0_i32_1 = arith.constant 0 : i32
    return %c0_i32, %c0_i32_0 : i32, i32
  }
  func.func @transform_6(%arg0: i32) -> (i32, i32) {
    %c0_i32 = arith.constant 0 : i32
    %c0_i32_0 = arith.constant 0 : i32
    %c0_i32_1 = arith.constant 0 : i32
    return %c0_i32, %c0_i32_0 : i32, i32
  }
  func.func @transform_7(%arg0: i32) -> (i32, i32) {
    %c0_i32 = arith.constant 0 : i32
    %c0_i32_0 = arith.constant 0 : i32
    %c0_i32_1 = arith.constant 0 : i32
    return %c0_i32, %c0_i32_0 : i32, i32
  }
  func.func @transform_8(%arg0: i32) -> (i32, i32) {
    %c0_i32 = arith.constant 0 : i32
    %c0_i32_0 = arith.constant 0 : i32
    %c0_i32_1 = arith.constant 0 : i32
    return %c0_i32, %c0_i32_0 : i32, i32
  }
  func.func @transform_9(%arg0: i32) -> (i32, i32) {
    %c0_i32 = arith.constant 0 : i32
    %c0_i32_0 = arith.constant 0 : i32
    %c0_i32_1 = arith.constant 0 : i32
    return %c0_i32, %c0_i32_0 : i32, i32
  }
  func.func @transform_10(%arg0: i32) -> (i32, i32) {
    %c0_i32 = arith.constant 0 : i32
    %c0_i32_0 = arith.constant 0 : i32
    %c0_i32_1 = arith.constant 0 : i32
    return %c0_i32, %c0_i32_0 : i32, i32
  }
  func.func @transform_11(%arg0: i32) -> (i32, i32, i32) {
    %c0_i32 = arith.constant 0 : i32
    %c0_i32_0 = arith.constant 0 : i32
    %c0_i32_1 = arith.constant 0 : i32
    return %arg0, %c0_i32, %c0_i32_0 : i32, i32, i32
  }
}

</mosaic_0001>

<llo_original>
// kernel: tcn_forward.1
$region0: #{tcn_forward.1}
  #allocation0 [shape = 'u32[]', space=smem, size = 0x4, offset = 0x4, fixed_abs, tag = 'smem constant byte address 0x4 - core index']
  #allocation1 [shape = 'u32[144,128]{1,0:T(1,128)}', space=vmem, size = 0x12000, scoped, tag = 'internal scratch']
  %s0 = inlined_call_operand.vmem [shape: bf16[2,4,16], index: 0, kind: input, shape index: {}]
  %s1 = inlined_call_operand.hbm [shape: bf16[8,12], index: 1, kind: input, shape index: {}]
  %s2 = inlined_call_operand.hbm [shape: f32[8,1], index: 2, kind: input, shape index: {}]
  %s3 = inlined_call_operand.hbm [shape: bf16[8,24], index: 3, kind: input, shape index: {}]
  %s4 = inlined_call_operand.hbm [shape: f32[8,1], index: 4, kind: input, shape index: {}]
  %s5 = inlined_call_operand.hbm [shape: bf16[8,4], index: 5, kind: input, shape index: {}]
  %s6 = inlined_call_operand.vmem [shape: f32[8,1], index: 6, kind: input, shape index: {}]
  %s7 = inlined_call_operand.hbm [shape: bf16[8,24], index: 7, kind: input, shape index: {}]
  %s8 = inlined_call_operand.vmem [shape: f32[8,1], index: 8, kind: input, shape index: {}]
  %s9 = inlined_call_operand.vmem [shape: bf16[8,24], index: 9, kind: input, shape index: {}]
  %s10 = inlined_call_operand.vmem [shape: f32[8,1], index: 10, kind: input, shape index: {}]
  %s11 = inlined_call_operand.vmem [shape: f32[2,8,1], index: 11, kind: output, shape index: {}]
  %s12 = sld [smem:[#allocation0]]
  $region101: #{tcn_forward.1} parent=0
    _
  %s14 = ssub.s32 1, %s12
  %s15 = scalar_select 0, %s14, %s12
  $region1: #{tcn_forward.1} parent=0
    #allocation2 [shape = 'u8[2048]{0}', space=vmem, size = 0x800, scoped, tag = 'input window, operand 1, single buffered']
    #allocation3 [shape = 's32[2]{0}', space=sflag, size = 0x8, scoped, tag = 'scoped memory for tcn_forward.1']
    #allocation4 [shape = 'u8[4096]{0}', space=vmem, size = 0x1000, scoped, tag = 'input window, operand 2, single buffered']
    #allocation5 [shape = 's32[1]{0}', space=sflag, size = 0x4, scoped, tag = 'scoped memory for tcn_forward.1']
    #allocation6 [shape = 'u8[2048]{0}', space=vmem, size = 0x800, scoped, tag = 'input window, operand 3, single buffered']
    #allocation7 [shape = 'u8[4096]{0}', space=vmem, size = 0x1000, scoped, tag = 'input window, operand 4, single buffered']
    #allocation8 [shape = 's32[1]{0}', space=sflag, size = 0x4, scoped, tag = 'scoped memory for tcn_forward.1']
    #allocation9 [shape = 'u8[2048]{0}', space=vmem, size = 0x800, scoped, tag = 'input window, operand 5, single buffered']
    #allocation10 [shape = 'u8[2048]{0}', space=vmem, size = 0x800, scoped, tag = 'input window, operand 7, single buffered']
    #allocation11 [shape = 's32[1]{0}', space=sflag, size = 0x4, scoped, tag = 'scoped memory for tcn_forward.1']
    %16 = vsyncpa [#allocation3], 0
    %17 = vsyncpa [#allocation5], 0
    %18 = vsyncpa [#allocation8], 0
    %19 = vsyncpa [#allocation11], 0
    loop: start=0, step=1, limit=4
    $region2: #{tcn_forward.1} parent=1 // loop_pre_header
      _
    $region3: #{tcn_forward.1} parent=1 // loop_header
      %s21 = sphi 0, %s25
      %p22 = scmp.ge.s32.totalorder %s21, 4
      %s31 = sphi 0, %s33
      %s34 = sphi 0, %s31
      %s35 = sphi 0, %s34
      %s51 = sphi 0, %s35
      %s55 = sphi 0, %s55
      %s57 = sphi 0, %s55
      %s58 = sphi 0, %s57
      %s72 = sphi 0, %s58
      %s76 = sphi 0, %s76
      %s78 = sphi 0, %s76
      %s79 = sphi 0, %s78
      %s93 = sphi 0, %s79
      %s97 = sphi 0, %s97
      %s99 = sphi 0, %s97
      %s100 = sphi 0, %s99
      %s114 = sphi 0, %s100
      %s118 = sphi 0, %s118
      %s120 = sphi 0, %s118
      %s121 = sphi 0, %s120
      %s135 = sphi 0, %s121
      %s139 = sphi 0, %s139
      %s141 = sphi 0, %s139
      %s142 = sphi 0, %s141
      %s156 = sphi 0, %s142
      %s160 = sphi 0, %s160
      %s162 = sphi 0, %s160
      %s163 = sphi 0, %s162
      %s177 = sphi 0, %s163
      %s181 = sphi 0, %s181
      %s183 = sphi 0, %s181
      %s184 = sphi 0, %s183
      %s198 = sphi 0, %s184
      %s202 = sphi 0, %s202
      %s204 = sphi 0, %s202
      %s205 = sphi 0, %s204
      %s219 = sphi 0, %s205
      %s223 = sphi 0, %s223
      %s225 = sphi 0, %s223
      %s226 = sphi 0, %s225
      %s240 = sphi 0, %s226
      %s244 = sphi 0, %s244
      %s246 = sphi 0, %s244
      %s247 = sphi 0, %s246
      %s261 = sphi 0, %s247
      %s267 = sphi 0, %s269
      %s270 = sphi 0, %s267
      %s271 = sphi 0, %s270
      %s287 = sphi 0, %s271
    $region4: #{tcn_forward.1} parent=1 // loop_header_branch
      %24 = sbr.rel (%p22) target = $region8
    $region5: #{tcn_forward.1} parent=1 // loop_body
      %s26 = ssub.s32 %s21, 1
      %s27 = ssub.s32 %s21, 2
      %s28 = sadd.s32 %s21, 1
      %s29 = ssub.s32 %s21, %s28
      %p30 = scmp.eq.s32.totalorder %s29, 0
      %s32 = sadd.s32 %s31, 1
      %s33 = scalar_select %p30, %s31, %s32
      %p36 = pneg %p30
      %p37 = scmp.eq.s32.totalorder %s21, 1
      %p38 = por %p36, %p37
      %p39 = scmp.ne.s32.totalorder %s31, %s34
      %p40 = scmp.eq.s32.totalorder %s21, 0
      %p41 = por %p39, %p40
      %p42 = scmp.ne.s32.totalorder %s31, %s34
      %p43 = scmp.eq.s32.totalorder %s26, 1
      %p44 = por %p42, %p43
      %p45 = scmp.ne.s32.totalorder %s34, %s35
      %p46 = scmp.eq.s32.totalorder %s26, 0
      %p47 = por %p45, %p46
      %p48 = scmp.ne.s32.totalorder %s34, %s35
      %p49 = scmp.eq.s32.totalorder %s27, 1
      %p50 = por %p48, %p49
      %p52 = scmp.ne.s32.totalorder %s35, %s51
      %p53 = scmp.eq.s32.totalorder %s27, 0
      %p54 = por %p52, %p53
      %s56 = sadd.s32 %s55, 1
      %p59 = scmp.eq.s32.totalorder %s21, 1
      %p60 = scmp.ne.s32.totalorder %s55, %s57
      %p61 = scmp.eq.s32.totalorder %s21, 0
      %p62 = por %p60, %p61
      %p63 = scmp.ne.s32.totalorder %s55, %s57
      %p64 = scmp.eq.s32.totalorder %s26, 1
      %p65 = por %p63, %p64
      %p66 = scmp.ne.s32.totalorder %s57, %s58
      %p67 = scmp.eq.s32.totalorder %s26, 0
      %p68 = por %p66, %p67
      %p69 = scmp.ne.s32.totalorder %s57, %s58
      %p70 = scmp.eq.s32.totalorder %s27, 1
      %p71 = por %p69, %p70
      %p73 = scmp.ne.s32.totalorder %s58, %s72
      %p74 = scmp.eq.s32.totalorder %s27, 0
      %p75 = por %p73, %p74
      %s77 = sadd.s32 %s76, 1
      %p80 = scmp.eq.s32.totalorder %s21, 1
      %p81 = scmp.ne.s32.totalorder %s76, %s78
      %p82 = scmp.eq.s32.totalorder %s21, 0
      %p83 = por %p81, %p82
      %p84 = scmp.ne.s32.totalorder %s76, %s78
      %p85 = scmp.eq.s32.totalorder %s26, 1
      %p86 = por %p84, %p85
      %p87 = scmp.ne.s32.totalorder %s78, %s79
      %p88 = scmp.eq.s32.totalorder %s26, 0
      %p89 = por %p87, %p88
      %p90 = scmp.ne.s32.totalorder %s78, %s79
      %p91 = scmp.eq.s32.totalorder %s27, 1
      %p92 = por %p90, %p91
      %p94 = scmp.ne.s32.totalorder %s79, %s93
      %p95 = scmp.eq.s32.totalorder %s27, 0
      %p96 = por %p94, %p95
      %s98 = sadd.s32 %s97, 1
      %p101 = scmp.eq.s32.totalorder %s21, 1
      %p102 = scmp.ne.s32.totalorder %s97, %s99
      %p103 = scmp.eq.s32.totalorder %s21, 0
      %p104 = por %p102, %p103
      %p105 = scmp.ne.s32.totalorder %s97, %s99
      %p106 = scmp.eq.s32.totalorder %s26, 1
      %p107 = por %p105, %p106
      %p108 = scmp.ne.s32.totalorder %s99, %s100
      %p109 = scmp.eq.s32.totalorder %s26, 0
      %p110 = por %p108, %p109
      %p111 = scmp.ne.s32.totalorder %s99, %s100
      %p112 = scmp.eq.s32.totalorder %s27, 1
      %p113 = por %p111, %p112
      %p115 = scmp.ne.s32.totalorder %s100, %s114
      %p116 = scmp.eq.s32.totalorder %s27, 0
      %p117 = por %p115, %p116
      %s119 = sadd.s32 %s118, 1
      %p122 = scmp.eq.s32.totalorder %s21, 1
      %p123 = scmp.ne.s32.totalorder %s118, %s120
      %p124 = scmp.eq.s32.totalorder %s21, 0
      %p125 = por %p123, %p124
      %p126 = scmp.ne.s32.totalorder %s118, %s120
      %p127 = scmp.eq.s32.totalorder %s26, 1
      %p128 = por %p126, %p127
      %p129 = scmp.ne.s32.totalorder %s120, %s121
      %p130 = scmp.eq.s32.totalorder %s26, 0
      %p131 = por %p129, %p130
      %p132 = scmp.ne.s32.totalorder %s120, %s121
      %p133 = scmp.eq.s32.totalorder %s27, 1
      %p134 = por %p132, %p133
      %p136 = scmp.ne.s32.totalorder %s121, %s135
      %p137 = scmp.eq.s32.totalorder %s27, 0
      %p138 = por %p136, %p137
      %s140 = sadd.s32 %s139, 1
      %p143 = scmp.eq.s32.totalorder %s21, 1
      %p144 = scmp.ne.s32.totalorder %s139, %s141
      %p145 = scmp.eq.s32.totalorder %s21, 0
      %p146 = por %p144, %p145
      %p147 = scmp.ne.s32.totalorder %s139, %s141
      %p148 = scmp.eq.s32.totalorder %s26, 1
      %p149 = por %p147, %p148
      %p150 = scmp.ne.s32.totalorder %s141, %s142
      %p151 = scmp.eq.s32.totalorder %s26, 0
      %p152 = por %p150, %p151
      %p153 = scmp.ne.s32.totalorder %s141, %s142
      %p154 = scmp.eq.s32.totalorder %s27, 1
      %p155 = por %p153, %p154
      %p157 = scmp.ne.s32.totalorder %s142, %s156
      %p158 = scmp.eq.s32.totalorder %s27, 0
      %p159 = por %p157, %p158
      %s161 = sadd.s32 %s160, 1
      %p164 = scmp.eq.s32.totalorder %s21, 1
      %p165 = scmp.ne.s32.totalorder %s160, %s162
      %p166 = scmp.eq.s32.totalorder %s21, 0
      %p167 = por %p165, %p166
      %p168 = scmp.ne.s32.totalorder %s160, %s162
      %p169 = scmp.eq.s32.totalorder %s26, 1
      %p170 = por %p168, %p169
      %p171 = scmp.ne.s32.totalorder %s162, %s163
      %p172 = scmp.eq.s32.totalorder %s26, 0
      %p173 = por %p171, %p172
      %p174 = scmp.ne.s32.totalorder %s162, %s163
      %p175 = scmp.eq.s32.totalorder %s27, 1
      %p176 = por %p174, %p175
      %p178 = scmp.ne.s32.totalorder %s163, %s177
      %p179 = scmp.eq.s32.totalorder %s27, 0
      %p180 = por %p178, %p179
      %s182 = sadd.s32 %s181, 1
      %p185 = scmp.eq.s32.totalorder %s21, 1
      %p186 = scmp.ne.s32.totalorder %s181, %s183
      %p187 = scmp.eq.s32.totalorder %s21, 0
      %p188 = por %p186, %p187
      %p189 = scmp.ne.s32.totalorder %s181, %s183
      %p190 = scmp.eq.s32.totalorder %s26, 1
      %p191 = por %p189, %p190
      %p192 = scmp.ne.s32.totalorder %s183, %s184
      %p193 = scmp.eq.s32.totalorder %s26, 0
      %p194 = por %p192, %p193
      %p195 = scmp.ne.s32.totalorder %s183, %s184
      %p196 = scmp.eq.s32.totalorder %s27, 1
      %p197 = por %p195, %p196
      %p199 = scmp.ne.s32.totalorder %s184, %s198
      %p200 = scmp.eq.s32.totalorder %s27, 0
      %p201 = por %p199, %p200
      %s203 = sadd.s32 %s202, 1
      %p206 = scmp.eq.s32.totalorder %s21, 1
      %p207 = scmp.ne.s32.totalorder %s202, %s204
      %p208 = scmp.eq.s32.totalorder %s21, 0
      %p209 = por %p207, %p208
      %p210 = scmp.ne.s32.totalorder %s202, %s204
      %p211 = scmp.eq.s32.totalorder %s26, 1
      %p212 = por %p210, %p211
      %p213 = scmp.ne.s32.totalorder %s204, %s205
      %p214 = scmp.eq.s32.totalorder %s26, 0
      %p215 = por %p213, %p214
      %p216 = scmp.ne.s32.totalorder %s204, %s205
      %p217 = scmp.eq.s32.totalorder %s27, 1
      %p218 = por %p216, %p217
      %p220 = scmp.ne.s32.totalorder %s205, %s219
      %p221 = scmp.eq.s32.totalorder %s27, 0
      %p222 = por %p220, %p221
      %s224 = sadd.s32 %s223, 1
      %p227 = scmp.eq.s32.totalorder %s21, 1
      %p228 = scmp.ne.s32.totalorder %s223, %s225
      %p229 = scmp.eq.s32.totalorder %s21, 0
      %p230 = por %p228, %p229
      %p231 = scmp.ne.s32.totalorder %s223, %s225
      %p232 = scmp.eq.s32.totalorder %s26, 1
      %p233 = por %p231, %p232
      %p234 = scmp.ne.s32.totalorder %s225, %s226
      %p235 = scmp.eq.s32.totalorder %s26, 0
      %p236 = por %p234, %p235
      %p237 = scmp.ne.s32.totalorder %s225, %s226
      %p238 = scmp.eq.s32.totalorder %s27, 1
      %p239 = por %p237, %p238
      %p241 = scmp.ne.s32.totalorder %s226, %s240
      %p242 = scmp.eq.s32.totalorder %s27, 0
      %p243 = por %p241, %p242
      %s245 = sadd.s32 %s244, 1
      %p248 = scmp.eq.s32.totalorder %s21, 1
      %p249 = scmp.ne.s32.totalorder %s244, %s246
      %p250 = scmp.eq.s32.totalorder %s21, 0
      %p251 = por %p249, %p250
      %p252 = scmp.ne.s32.totalorder %s244, %s246
      %p253 = scmp.eq.s32.totalorder %s26, 1
      %p254 = por %p252, %p253
      %p255 = scmp.ne.s32.totalorder %s246, %s247
      %p256 = scmp.eq.s32.totalorder %s26, 0
      %p257 = por %p255, %p256
      %p258 = scmp.ne.s32.totalorder %s246, %s247
      %p259 = scmp.eq.s32.totalorder %s27, 1
      %p260 = por %p258, %p259
      %p262 = scmp.ne.s32.totalorder %s247, %s261
      %p263 = scmp.eq.s32.totalorder %s27, 0
      %p264 = por %p262, %p263
      %s265 = ssub.s32 %s21, %s28
      %p266 = scmp.eq.s32.totalorder %s265, 0
      %s268 = sadd.s32 %s267, 1
      %s269 = scalar_select %p266, %s267, %s268
      %p272 = pneg %p266
      %p273 = scmp.eq.s32.totalorder %s21, 1
      %p274 = por %p272, %p273
      %p275 = scmp.ne.s32.totalorder %s267, %s270
      %p276 = scmp.eq.s32.totalorder %s21, 0
      %p277 = por %p275, %p276
      %p278 = scmp.ne.s32.totalorder %s267, %s270
      %p279 = scmp.eq.s32.totalorder %s26, 1
      %p280 = por %p278, %p279
      %p281 = scmp.ne.s32.totalorder %s270, %s271
      %p282 = scmp.eq.s32.totalorder %s26, 0
      %p283 = por %p281, %p282
      %p284 = scmp.ne.s32.totalorder %s270, %s271
      %p285 = scmp.eq.s32.totalorder %s27, 1
      %p286 = por %p284, %p285
      %p288 = scmp.ne.s32.totalorder %s271, %s287
      %p289 = scmp.eq.s32.totalorder %s27, 0
      %p290 = por %p288, %p289
      %p291 = scmp.le.s32.totalorder 1, %s21
      %p292 = scmp.lt.s32.totalorder %s21, 3
      %p293 = pnand %p291, %p292
      %p294 = pneg %p293
      // Predicated region
      $region9: #{tcn_forward.1} parent=5 // pred_check
        _
      $region10: #{tcn_forward.1} parent=5 // pred_check_branch
        %296 = sbr.rel (%p293) target = $region12
      $region11: #{tcn_forward.1} parent=5 // pred_region
        %s297 = ssub.s32 %s21, 1
        // Predicated region
        $region13: #{tcn_forward.1} parent=11 // pred_check
          %p298 = pneg %p68
        $region14: #{tcn_forward.1} parent=11 // pred_check_branch
          %300 = sbr.rel (%p298) target = $region16
        $region15: #{tcn_forward.1} parent=11 // pred_region
          %s302 = ssub.s32 64, 64
          %303 = vsyncadd [#allocation3], %s302
          %s305 = sshll.u32 [#allocation2], 4
          %s306 = int_to_ptr.vmem [resolvable:$true] %s305
          %308 = dma.hbm_to_vmem [thread:$0]  %s1, 64, %s306, [#allocation3]
        $region16: #{tcn_forward.1} parent=11 // pred_fallthru
          _
        // Predicated region
        $region17: #{tcn_forward.1} parent=11 // pred_check
          %p309 = pneg %p89
        $region18: #{tcn_forward.1} parent=11 // pred_check_branch
          %311 = sbr.rel (%p309) target = $region20
        $region19: #{tcn_forward.1} parent=11 // pred_region
          %s313 = ssub.s32 128, 128
          %314 = vsyncadd [#allocation5], %s313
          %s316 = sshll.u32 [#allocation4], 4
          %s317 = int_to_ptr.vmem [resolvable:$true] %s316
          %319 = dma.hbm_to_vmem [thread:$0]  %s2, 128, %s317, [#allocation5]
        $region20: #{tcn_forward.1} parent=11 // pred_fallthru
          _
        // Predicated region
        $region21: #{tcn_forward.1} parent=11 // pred_check
          %p320 = pneg %p110
        $region22: #{tcn_forward.1} parent=11 // pred_check_branch
          %322 = sbr.rel (%p320) target = $region24
        $region23: #{tcn_forward.1} parent=11 // pred_region
          %s324 = ssub.s32 64, 64
          %325 = vsyncadd [#allocation5], %s324
          %s327 = sshll.u32 [#allocation6], 4
          %s328 = int_to_ptr.vmem [resolvable:$true] %s327
          %330 = dma.hbm_to_vmem [thread:$0]  %s3, 64, %s328, [#allocation5]
        $region24: #{tcn_forward.1} parent=11 // pred_fallthru
          _
        // Predicated region
        $region25: #{tcn_forward.1} parent=11 // pred_check
          %p331 = pneg %p131
        $region26: #{tcn_forward.1} parent=11 // pred_check_branch
          %333 = sbr.rel (%p331) target = $region28
        $region27: #{tcn_forward.1} parent=11 // pred_region
          %s335 = ssub.s32 128, 128
          %336 = vsyncadd [#allocation8], %s335
          %s338 = sshll.u32 [#allocation7], 4
          %s339 = int_to_ptr.vmem [resolvable:$true] %s338
          %341 = dma.hbm_to_vmem [thread:$0]  %s4, 128, %s339, [#allocation8]
        $region28: #{tcn_forward.1} parent=11 // pred_fallthru
          _
        // Predicated region
        $region29: #{tcn_forward.1} parent=11 // pred_check
          %p342 = pneg %p152
        $region30: #{tcn_forward.1} parent=11 // pred_check_branch
          %344 = sbr.rel (%p342) target = $region32
        $region31: #{tcn_forward.1} parent=11 // pred_region
          %s346 = ssub.s32 64, 64
          %347 = vsyncadd [#allocation8], %s346
          %s349 = sshll.u32 [#allocation9], 4
          %s350 = int_to_ptr.vmem [resolvable:$true] %s349
          %352 = dma.hbm_to_vmem [thread:$0]  %s5, 64, %s350, [#allocation8]
        $region32: #{tcn_forward.1} parent=11 // pred_fallthru
          _
        // Predicated region
        $region33: #{tcn_forward.1} parent=11 // pred_check
          %p353 = pneg %p173
        $region34: #{tcn_forward.1} parent=11 // pred_check_branch
          %355 = sbr.rel (%p353) target = $region36
        $region35: #{tcn_forward.1} parent=11 // pred_region
          _
        $region36: #{tcn_forward.1} parent=11 // pred_fallthru
          _
        // Predicated region
        $region37: #{tcn_forward.1} parent=11 // pred_check
          %p356 = pneg %p194
        $region38: #{tcn_forward.1} parent=11 // pred_check_branch
          %358 = sbr.rel (%p356) target = $region40
        $region39: #{tcn_forward.1} parent=11 // pred_region
          %s360 = ssub.s32 64, 64
          %361 = vsyncadd [#allocation11], %s360
          %s363 = sshll.u32 [#allocation10], 4
          %s364 = int_to_ptr.vmem [resolvable:$true] %s363
          %366 = dma.hbm_to_vmem [thread:$0]  %s7, 64, %s364, [#allocation11]
        $region40: #{tcn_forward.1} parent=11 // pred_fallthru
          _
        // Predicated region
        $region41: #{tcn_forward.1} parent=11 // pred_check
          %p367 = pneg %p215
        $region42: #{tcn_forward.1} parent=11 // pred_check_branch
          %369 = sbr.rel (%p367) target = $region44
        $region43: #{tcn_forward.1} parent=11 // pred_region
          _
        $region44: #{tcn_forward.1} parent=11 // pred_fallthru
          _
        // Predicated region
        $region45: #{tcn_forward.1} parent=11 // pred_check
          %p370 = pneg %p236
        $region46: #{tcn_forward.1} parent=11 // pred_check_branch
          %372 = sbr.rel (%p370) target = $region48
        $region47: #{tcn_forward.1} parent=11 // pred_region
          _
        $region48: #{tcn_forward.1} parent=11 // pred_fallthru
          _
        // Predicated region
        $region49: #{tcn_forward.1} parent=11 // pred_check
          %p373 = pneg %p257
        $region50: #{tcn_forward.1} parent=11 // pred_check_branch
          %375 = sbr.rel (%p373) target = $region52
        $region51: #{tcn_forward.1} parent=11 // pred_region
          _
        $region52: #{tcn_forward.1} parent=11 // pred_fallthru
          _
      $region12: #{tcn_forward.1} parent=5 // pred_fallthru
        _
      %p376 = scmp.lt.s32.totalorder %s21, 2
      // Predicated region
      $region53: #{tcn_forward.1} parent=5 // pred_check
        %p377 = pneg %p376
      $region54: #{tcn_forward.1} parent=5 // pred_check_branch
        %379 = sbr.rel (%p377) target = $region56
      $region55: #{tcn_forward.1} parent=5 // pred_region
        // Predicated region
        $region57: #{tcn_forward.1} parent=55 // pred_check
          %p380 = pneg %p41
        $region58: #{tcn_forward.1} parent=55 // pred_check_branch
          %382 = sbr.rel (%p380) target = $region60
        $region59: #{tcn_forward.1} parent=55 // pred_region
          %p383 = scmp.lt.s32.totalorder %s21, 1
          %s384 = scalar_select %p383, %s21, 1
          %s385 = smul.addr %s384, 2
          %s386 = scalar_lea.vmem %s0, %s385
        $region60: #{tcn_forward.1} parent=55 // pred_fallthru
          _
      $region56: #{tcn_forward.1} parent=5 // pred_fallthru
        _
      %p387 = scmp.le.s32.totalorder 1, %s21
      %p388 = scmp.lt.s32.totalorder %s21, 3
      %p389 = pnand %p387, %p388
      %p390 = pneg %p389
      // Predicated region
      $region61: #{tcn_forward.1} parent=5 // pred_check
        _
      $region62: #{tcn_forward.1} parent=5 // pred_check_branch
        %392 = sbr.rel (%p389) target = $region64
      $region63: #{tcn_forward.1} parent=5 // pred_region
        %s393 = ssub.s32 %s21, 1
        // Predicated region
        $region65: #{tcn_forward.1} parent=63 // pred_check
          %p394 = pneg %p68
        $region66: #{tcn_forward.1} parent=63 // pred_check_branch
          %396 = sbr.rel (%p394) target = $region68
        $region67: #{tcn_forward.1} parent=63 // pred_region
          %397 = dma.done [#allocation3], 64
        $region68: #{tcn_forward.1} parent=63 // pred_fallthru
          _
        // Predicated region
        $region69: #{tcn_forward.1} parent=63 // pred_check
          %p398 = pneg %p89
        $region70: #{tcn_forward.1} parent=63 // pred_check_branch
          %400 = sbr.rel (%p398) target = $region72
        $region71: #{tcn_forward.1} parent=63 // pred_region
          %401 = dma.done [#allocation5], 128
        $region72: #{tcn_forward.1} parent=63 // pred_fallthru
          _
        // Predicated region
        $region73: #{tcn_forward.1} parent=63 // pred_check
          %p402 = pneg %p110
        $region74: #{tcn_forward.1} parent=63 // pred_check_branch
          %404 = sbr.rel (%p402) target = $region76
        $region75: #{tcn_forward.1} parent=63 // pred_region
          %405 = dma.done [#allocation5], 64
        $region76: #{tcn_forward.1} parent=63 // pred_fallthru
          _
        // Predicated region
        $region77: #{tcn_forward.1} parent=63 // pred_check
          %p406 = pneg %p131
        $region78: #{tcn_forward.1} parent=63 // pred_check_branch
          %408 = sbr.rel (%p406) target = $region80
        $region79: #{tcn_forward.1} parent=63 // pred_region
          %409 = dma.done [#allocation8], 128
        $region80: #{tcn_forward.1} parent=63 // pred_fallthru
          _
        // Predicated region
        $region81: #{tcn_forward.1} parent=63 // pred_check
          %p410 = pneg %p152
        $region82: #{tcn_forward.1} parent=63 // pred_check_branch
          %412 = sbr.rel (%p410) target = $region84
        $region83: #{tcn_forward.1} parent=63 // pred_region
          %413 = dma.done [#allocation8], 64
        $region84: #{tcn_forward.1} parent=63 // pred_fallthru
          _
        // Predicated region
        $region85: #{tcn_forward.1} parent=63 // pred_check
          %p414 = pneg %p194
        $region86: #{tcn_forward.1} parent=63 // pred_check_branch
          %416 = sbr.rel (%p414) target = $region88
        $region87: #{tcn_forward.1} parent=63 // pred_region
          %417 = dma.done [#allocation11], 64
        $region88: #{tcn_forward.1} parent=63 // pred_fallthru
          _
        %p418 = scmp.lt.s32.totalorder %s26, 1
        %s419 = scalar_select %p418, %s26, 1
        %s420 = smul.addr %s419, 2
        %s421 = scalar_lea.vmem %s0, %s420
        %p422 = pneg %p47
        %p423 = pneg %p44
        %p424 = pneg %p68
        %p425 = pneg %p65
        %p426 = pneg %p89
        %p427 = pneg %p86
        %p428 = pneg %p110
        %p429 = pneg %p107
        %p430 = pneg %p131
        %p431 = pneg %p128
        %p432 = pneg %p152
        %p433 = pneg %p149
        %p434 = pneg %p173
        %p435 = pneg %p170
        %p436 = pneg %p194
        %p437 = pneg %p191
        %p438 = pneg %p215
        %p439 = pneg %p212
        %p440 = pneg %p236
        %p441 = pneg %p233
        %p442 = pneg %p257
        %p443 = pneg %p254
        %p444 = pneg %p283
        %p445 = pneg %p280
        %p446 = scmp.lt.s32.totalorder %s26, 1
        %s447 = scalar_select %p446, %s26, 1
        %s448 = smul.addr %s447, 8
        %s449 = scalar_lea.vmem %s11, %s448
        %p450 = scmp.lt.s32.totalorder %s26, 1
        %s451 = scalar_select %p450, %s26, 1
        %s452 = smul.addr %s451, 2
        %s453 = scalar_lea.vmem %s0, %s452
        %p454 = scmp.lt.s32.totalorder %s26, 1
        %s455 = scalar_select %p454, %s26, 1
        %s456 = smul.addr %s455, 8
        %s457 = scalar_lea.vmem %s11, %s456
        %v459 = vld [vmem:[%s453] sm:$0x3]
        %v462 = vunpack.c.l.s4 1983009808
        %v463 = vunpack.c.0.s8 %v462
        %v464 = vlaneseq
        %v465 = vshrl.u32 %v464, 7
        %v466 = vsub.s32 %v463, %v465
        %v467 = vrot.slane %v459, %v466
        %468 = vrot.lane.b32.xlu0 %v467, 2
        %v469 = vpop.permute.xlu0 %468
        %vm470 = vcmask 15360
        %v473 = vsel %vm470, 0, %v469
        %v475 = vrot.slane %v473, 6
        %476 = vrot.lane.b32.xlu0 %v475, 127
        %v477 = vpop.permute.xlu0 %476
        %v478 = vrot.slane %v473, 4
        %479 = vrot.lane.b32.xlu0 %v478, 126
        %v480 = vpop.permute.xlu0 %479
        %vm481 = vcmask 1041408
        %v483 = vsel %vm481, %v473, %v477
        %vm484 = vcmask 1043456
        %v486 = vsel %vm484, %v483, %v480
        %v487 = vld [vmem:[#allocation2] sm:$0xf]
        %v488 = vld [vmem:[#allocation4] sm:$0xff]
        %490 = vset.pattern.permute.xlu0 0
        %491 = vperm.xlu0 %490, %v488
        %v492 = vpop.permute.xlu0 %491
        %vm494 = vcmask 97280
        %v496 = vsel %vm494, %v487, 0
        %vm498 = vcmask 1045504
        %v499 = vsel %vm498, %v486, 0
        %501 = vmatprep.subr.bf16.mxu0 0
        %502 = vmatpush1.bf16.msra.mxu0 0
        %503 = vmatprep.subr.bf16.mxu0 0
        %504 = vmatpush1.bf16.msra.mxu0 0
        %505 = vmatprep.subr.bf16.mxu0 0
        %506 = vmatpush1.bf16.msra.mxu0 0
        %507 = vmatprep.subr.bf16.mxu0 0
        %508 = vmatpush1.bf16.msra.mxu0 0
        %509 = vmatprep.subr.bf16.mxu0 0
        %510 = vmatpush1.bf16.msra.mxu0 0
        %511 = vmatprep.subr.bf16.mxu0 0
        %512 = vmatpush1.bf16.msra.mxu0 0
        %513 = vmatprep.subr.bf16.mxu0 0
        %514 = vmatpush1.bf16.msra.mxu0 0
        %515 = vmatprep.subr.bf16.mxu0 0
        %516 = vmatpush1.bf16.msra.mxu0 %v499
        %517 = vmatprep.subr.bf16.mxu0 0
        %518 = vmatpush2.bf16.msra.mxu0 0
        %519 = vmatprep.subr.bf16.mxu0 0
        %520 = vmatpush2.bf16.msra.mxu0 0
        %521 = vmatprep.subr.bf16.mxu0 0
        %522 = vmatpush2.bf16.msra.mxu0 0
        %523 = vmatprep.subr.bf16.mxu0 0
        %524 = vmatpush2.bf16.msra.mxu0 0
        %525 = vmatprep.subr.bf16.mxu0 0
        %526 = vmatpush2.bf16.msra.mxu0 0
        %527 = vmatprep.subr.bf16.mxu0 0
        %528 = vmatpush2.bf16.msra.mxu0 0
        %529 = vmatprep.subr.bf16.mxu0 0
        %530 = vmatpush2.bf16.msra.mxu0 0
        %531 = vmatprep.subr.bf16.mxu0 0
        %532 = vmatpush2.bf16.msra.mxu0 0
        %533 = vmatprep.mubr.bf16.mxu0 0
        %534 = vmatmul.mubr.bf16.gmra.mxu0 %v496
        %v535 = vpop.f32.mrf.mxu0
        %v536 = vadd.f32 %v492, %v535
        %v537 = vpop.f32.mrf.mxu0
        %v538 = vpop.f32.mrf.mxu0
        %v539 = vpop.f32.mrf.mxu0
        %540 = vdwg.mxu0
        %v541 = vmax.f32 %v536, 0.0
        %v542 = vpack.c.bf16 %v541, %v541
        %544 = vrot.lane.b32.xlu0 %v542, 2
        %v545 = vpop.permute.xlu0 %544
        %v547 = vsel %vm470, 0, %v545
        %v549 = vrot.slane %v547, 4
        %550 = vrot.lane.b32.xlu0 %v549, 127
        %v551 = vpop.permute.xlu0 %550
        %552 = vrot.lane.b32.xlu0 %v547, 126
        %v553 = vpop.permute.xlu0 %552
        %v555 = vsel %vm484, %v547, %v551
        %v557 = vld [vmem:[#allocation6] sm:$0xf]
        %v558 = vld [vmem:[#allocation7] sm:$0xff]
        %560 = vset.pattern.permute.xlu0 0
        %561 = vperm.xlu0 %560, %v558
        %v562 = vpop.permute.xlu0 %561
        %vm564 = vcmask 195584
        %v566 = vsel %vm564, %v557, 0
        %v569 = vsel %vm484, %v553, 0
        %571 = vmatprep.subr.bf16.mxu0 0
        %572 = vmatpush1.bf16.msra.mxu0 0
        %573 = vmatprep.subr.bf16.mxu0 0
        %574 = vmatpush1.bf16.msra.mxu0 0
        %575 = vmatprep.subr.bf16.mxu0 0
        %576 = vmatpush1.bf16.msra.mxu0 0
        %577 = vmatprep.subr.bf16.mxu0 0
        %578 = vmatpush1.bf16.msra.mxu0 0
        %579 = vmatprep.subr.bf16.mxu0 0
        %580 = vmatpush1.bf16.msra.mxu0 0
        %581 = vmatprep.subr.bf16.mxu0 0
        %582 = vmatpush1.bf16.msra.mxu0 0
        %583 = vmatprep.subr.bf16.mxu0 0
        %584 = vmatpush1.bf16.msra.mxu0 %v569
        %585 = vmatprep.subr.bf16.mxu0 0
        %586 = vmatpush1.bf16.msra.mxu0 %v555
        %587 = vmatprep.subr.bf16.mxu0 0
        %588 = vmatpush2.bf16.msra.mxu0 0
        %589 = vmatprep.subr.bf16.mxu0 0
        %590 = vmatpush2.bf16.msra.mxu0 0
        %591 = vmatprep.subr.bf16.mxu0 0
        %592 = vmatpush2.bf16.msra.mxu0 0
        %593 = vmatprep.subr.bf16.mxu0 0
        %594 = vmatpush2.bf16.msra.mxu0 0
        %595 = vmatprep.subr.bf16.mxu0 0
        %596 = vmatpush2.bf16.msra.mxu0 0
        %597 = vmatprep.subr.bf16.mxu0 0
        %598 = vmatpush2.bf16.msra.mxu0 0
        %599 = vmatprep.subr.bf16.mxu0 0
        %600 = vmatpush2.bf16.msra.mxu0 0
        %601 = vmatprep.subr.bf16.mxu0 0
        %602 = vmatpush2.bf16.msra.mxu0 0
        %603 = vmatprep.mubr.bf16.mxu0 0
        %604 = vmatmul.mubr.bf16.gmra.mxu0 %v566
        %v605 = vpop.f32.mrf.mxu0
        %v606 = vadd.f32 %v562, %v605
        %v607 = vpop.f32.mrf.mxu0
        %v608 = vpop.f32.mrf.mxu0
        %v609 = vpop.f32.mrf.mxu0
        %610 = vdwg.mxu0
        %v611 = vmax.f32 %v606, 0.0
        %v612 = vld [vmem:[#allocation9] sm:$0xf]
        %v613 = vld [vmem:[%s6] sm:$0xff]
        %615 = vset.pattern.permute.xlu0 0
        %616 = vperm.xlu0 %615, %v613
        %v617 = vpop.permute.xlu0 %616
        %vm619 = vcmask 31744
        %v621 = vsel %vm619, %v612, 0
        %v624 = vsel %vm481, %v459, 0
        %626 = vmatprep.subr.bf16.mxu0 0
        %627 = vmatpush1.bf16.msra.mxu0 0
        %628 = vmatprep.subr.bf16.mxu0 0
        %629 = vmatpush1.bf16.msra.mxu0 0
        %630 = vmatprep.subr.bf16.mxu0 0
        %631 = vmatpush1.bf16.msra.mxu0 0
        %632 = vmatprep.subr.bf16.mxu0 0
        %633 = vmatpush1.bf16.msra.mxu0 0
        %634 = vmatprep.subr.bf16.mxu0 0
        %635 = vmatpush1.bf16.msra.mxu0 0
        %636 = vmatprep.subr.bf16.mxu0 0
        %637 = vmatpush1.bf16.msra.mxu0 0
        %638 = vmatprep.subr.bf16.mxu0 0
        %639 = vmatpush1.bf16.msra.mxu0 0
        %640 = vmatprep.subr.bf16.mxu0 0
        %641 = vmatpush1.bf16.msra.mxu0 %v624
        %642 = vmatprep.subr.bf16.mxu0 0
        %643 = vmatpush2.bf16.msra.mxu0 0
        %644 = vmatprep.subr.bf16.mxu0 0
        %645 = vmatpush2.bf16.msra.mxu0 0
        %646 = vmatprep.subr.bf16.mxu0 0
        %647 = vmatpush2.bf16.msra.mxu0 0
        %648 = vmatprep.subr.bf16.mxu0 0
        %649 = vmatpush2.bf16.msra.mxu0 0
        %650 = vmatprep.subr.bf16.mxu0 0
        %651 = vmatpush2.bf16.msra.mxu0 0
        %652 = vmatprep.subr.bf16.mxu0 0
        %653 = vmatpush2.bf16.msra.mxu0 0
        %654 = vmatprep.subr.bf16.mxu0 0
        %655 = vmatpush2.bf16.msra.mxu0 0
        %656 = vmatprep.subr.bf16.mxu0 0
        %657 = vmatpush2.bf16.msra.mxu0 0
        %658 = vmatprep.mubr.bf16.mxu0 0
        %659 = vmatmul.mubr.bf16.gmra.mxu0 %v621
        %v660 = vpop.f32.mrf.mxu0
        %v661 = vadd.f32 %v617, %v660
        %v662 = vpop.f32.mrf.mxu0
        %v663 = vpop.f32.mrf.mxu0
        %v664 = vpop.f32.mrf.mxu0
        %665 = vdwg.mxu0
        %v666 = vadd.f32 %v611, %v661
        %v667 = vmax.f32 %v666, 0.0
        %v668 = vpack.c.bf16 %v667, %v667
        %670 = vrot.lane.b32.xlu0 %v668, 4
        %v671 = vpop.permute.xlu0 %670
        %v673 = vsel %vm619, 0, %v671
        %v675 = vrot.slane %v673, 4
        %676 = vrot.lane.b32.xlu0 %v675, 126
        %v677 = vpop.permute.xlu0 %676
        %678 = vrot.lane.b32.xlu0 %v673, 124
        %v679 = vpop.permute.xlu0 %678
        %v681 = vsel %vm484, %v673, %v677
        %v683 = vld [vmem:[#allocation10] sm:$0xf]
        %v684 = vld [vmem:[%s8] sm:$0xff]
        %686 = vset.pattern.permute.xlu0 0
        %687 = vperm.xlu0 %686, %v684
        %v688 = vpop.permute.xlu0 %687
        %v691 = vsel %vm564, %v683, 0
        %v694 = vsel %vm484, %v679, 0
        %696 = vmatprep.subr.bf16.mxu0 0
        %697 = vmatpush1.bf16.msra.mxu0 0
        %698 = vmatprep.subr.bf16.mxu0 0
        %699 = vmatpush1.bf16.msra.mxu0 0
        %700 = vmatprep.subr.bf16.mxu0 0
        %701 = vmatpush1.bf16.msra.mxu0 0
        %702 = vmatprep.subr.bf16.mxu0 0
        %703 = vmatpush1.bf16.msra.mxu0 0
        %704 = vmatprep.subr.bf16.mxu0 0
        %705 = vmatpush1.bf16.msra.mxu0 0
        %706 = vmatprep.subr.bf16.mxu0 0
        %707 = vmatpush1.bf16.msra.mxu0 0
        %708 = vmatprep.subr.bf16.mxu0 0
        %709 = vmatpush1.bf16.msra.mxu0 %v694
        %710 = vmatprep.subr.bf16.mxu0 0
        %711 = vmatpush1.bf16.msra.mxu0 %v681
        %712 = vmatprep.subr.bf16.mxu0 0
        %713 = vmatpush2.bf16.msra.mxu0 0
        %714 = vmatprep.subr.bf16.mxu0 0
        %715 = vmatpush2.bf16.msra.mxu0 0
        %716 = vmatprep.subr.bf16.mxu0 0
        %717 = vmatpush2.bf16.msra.mxu0 0
        %718 = vmatprep.subr.bf16.mxu0 0
        %719 = vmatpush2.bf16.msra.mxu0 0
        %720 = vmatprep.subr.bf16.mxu0 0
        %721 = vmatpush2.bf16.msra.mxu0 0
        %722 = vmatprep.subr.bf16.mxu0 0
        %723 = vmatpush2.bf16.msra.mxu0 0
        %724 = vmatprep.subr.bf16.mxu0 0
        %725 = vmatpush2.bf16.msra.mxu0 0
        %726 = vmatprep.subr.bf16.mxu0 0
        %727 = vmatpush2.bf16.msra.mxu0 0
        %728 = vmatprep.mubr.bf16.mxu0 0
        %729 = vmatmul.mubr.bf16.gmra.mxu0 %v691
        %v730 = vpop.f32.mrf.mxu0
        %v731 = vadd.f32 %v688, %v730
        %v732 = vpop.f32.mrf.mxu0
        %v733 = vpop.f32.mrf.mxu0
        %v734 = vpop.f32.mrf.mxu0
        %735 = vdwg.mxu0
        %v736 = vmax.f32 %v731, 0.0
        %v737 = vpack.c.bf16 %v736, %v736
        %739 = vrot.lane.b32.xlu0 %v737, 4
        %v740 = vpop.permute.xlu0 %739
        %v742 = vsel %vm619, 0, %v740
        %v744 = vrot.slane %v742, 4
        %745 = vrot.lane.b32.xlu0 %v744, 126
        %v746 = vpop.permute.xlu0 %745
        %747 = vrot.lane.b32.xlu0 %v742, 124
        %v748 = vpop.permute.xlu0 %747
        %v750 = vsel %vm484, %v742, %v746
        %v752 = vld [vmem:[%s9] sm:$0xf]
        %v753 = vld [vmem:[%s10] sm:$0xff]
        %755 = vset.pattern.permute.xlu0 0
        %756 = vperm.xlu0 %755, %v753
        %v757 = vpop.permute.xlu0 %756
        %v760 = vsel %vm564, %v752, 0
        %v763 = vsel %vm484, %v748, 0
        %765 = vmatprep.subr.bf16.mxu0 0
        %766 = vmatpush1.bf16.msra.mxu0 0
        %767 = vmatprep.subr.bf16.mxu0 0
        %768 = vmatpush1.bf16.msra.mxu0 0
        %769 = vmatprep.subr.bf16.mxu0 0
        %770 = vmatpush1.bf16.msra.mxu0 0
        %771 = vmatprep.subr.bf16.mxu0 0
        %772 = vmatpush1.bf16.msra.mxu0 0
        %773 = vmatprep.subr.bf16.mxu0 0
        %774 = vmatpush1.bf16.msra.mxu0 0
        %775 = vmatprep.subr.bf16.mxu0 0
        %776 = vmatpush1.bf16.msra.mxu0 0
        %777 = vmatprep.subr.bf16.mxu0 0
        %778 = vmatpush1.bf16.msra.mxu0 %v763
        %779 = vmatprep.subr.bf16.mxu0 0
        %780 = vmatpush1.bf16.msra.mxu0 %v750
        %781 = vmatprep.subr.bf16.mxu0 0
        %782 = vmatpush2.bf16.msra.mxu0 0
        %783 = vmatprep.subr.bf16.mxu0 0
        %784 = vmatpush2.bf16.msra.mxu0 0
        %785 = vmatprep.subr.bf16.mxu0 0
        %786 = vmatpush2.bf16.msra.mxu0 0
        %787 = vmatprep.subr.bf16.mxu0 0
        %788 = vmatpush2.bf16.msra.mxu0 0
        %789 = vmatprep.subr.bf16.mxu0 0
        %790 = vmatpush2.bf16.msra.mxu0 0
        %791 = vmatprep.subr.bf16.mxu0 0
        %792 = vmatpush2.bf16.msra.mxu0 0
        %793 = vmatprep.subr.bf16.mxu0 0
        %794 = vmatpush2.bf16.msra.mxu0 0
        %795 = vmatprep.subr.bf16.mxu0 0
        %796 = vmatpush2.bf16.msra.mxu0 0
        %797 = vmatprep.mubr.bf16.mxu0 0
        %798 = vmatmul.mubr.bf16.gmra.mxu0 %v760
        %v799 = vpop.f32.mrf.mxu0
        %v800 = vadd.f32 %v757, %v799
        %v801 = vpop.f32.mrf.mxu0
        %v802 = vpop.f32.mrf.mxu0
        %v803 = vpop.f32.mrf.mxu0
        %804 = vdwg.mxu0
        %v805 = vmax.f32 %v800, 0.0
        %v806 = vunpack.c.l.bf16 %v668
        %v807 = vadd.f32 %v805, %v806
        %v808 = vmax.f32 %v807, 0.0
        %810 = vrot.lane.b32.xlu0 %v808, 113
        %v811 = vpop.permute.xlu0 %810
        %vm813 = vcmask 7168
        %814 = vst.msk [vmem:[%s457] sm:$0xff] %vm813, %v811
        %p815 = scmp.lt.s32.totalorder %s26, 1
        %s816 = scalar_select %p815, %s26, 1
        %s817 = smul.addr %s816, 8
        %s818 = scalar_lea.vmem %s11, %s817
        // Predicated region
        $region89: #{tcn_forward.1} parent=63 // pred_check
          %p819 = pneg %p280
        $region90: #{tcn_forward.1} parent=63 // pred_check_branch
          %821 = sbr.rel (%p819) target = $region92
        $region91: #{tcn_forward.1} parent=63 // pred_region
          _
        $region92: #{tcn_forward.1} parent=63 // pred_fallthru
          _
      $region64: #{tcn_forward.1} parent=5 // pred_fallthru
        _
      %p822 = scmp.le.s32.totalorder 2, %s21
      // Predicated region
      $region93: #{tcn_forward.1} parent=5 // pred_check
        %p823 = pneg %p822
      $region94: #{tcn_forward.1} parent=5 // pred_check_branch
        %825 = sbr.rel (%p823) target = $region96
      $region95: #{tcn_forward.1} parent=5 // pred_region
        %s826 = ssub.s32 %s21, 2
        // Predicated region
        $region97: #{tcn_forward.1} parent=95 // pred_check
          %p827 = pneg %p286
        $region98: #{tcn_forward.1} parent=95 // pred_check_branch
          %829 = sbr.rel (%p827) target = $region100
        $region99: #{tcn_forward.1} parent=95 // pred_region
          %p830 = scmp.lt.s32.totalorder %s27, 1
          %s831 = scalar_select %p830, %s27, 1
          %s832 = smul.addr %s831, 8
          %s833 = scalar_lea.vmem %s11, %s832
        $region100: #{tcn_forward.1} parent=95 // pred_fallthru
          _
      $region96: #{tcn_forward.1} parent=5 // pred_fallthru
        _
    $region6: #{tcn_forward.1} parent=1 // loop_footer
      %s25 = sadd.s32 1, %s21
    $region7: #{tcn_forward.1} parent=1 // loop_footer_branch
      %20 = sbr.rel target = $region3
    $region8: #{tcn_forward.1} parent=1 // loop_exit
      _
    %834 = vsyncpa [#allocation3], 1
    %s835 = scalar_lea.sflag [#allocation3], 1
    %836 = vsyncpa %s835, 1
    %837 = vsyncpa [#allocation5], 1
    %838 = vsyncpa [#allocation8], 1
    %839 = vsyncpa [#allocation11], 1

</llo_original>
